<compile_context>
chip_gen: v5e
topology: v5e:2x2
jax: 0.10.0
libtpu: 0.0.40
codegen_flags: <defaults>
</compile_context>

<pallas_src>
import jax
import jax.numpy as jnp
from jax.experimental import pallas as pl
from jax.experimental.pallas import tpu as pltpu

_FMA_MAX_ROWS = 8        # unrolled-VPU path only when the flattened channel mix
                         # fits one sublane group (<= 8 broadcast-FMAs)
_MAX_TILE_COLS = 65536   # hard cap on TILE_L (bounds codegen size / VMEM temps)


def _conv1x1_tanh_kernel(x_ref, w_ref, b_ref, o_ref):
    # x_ref: (R_IN, TILE_L)   packed input rows  (TILE_B batches x C_in channels)
    # w_ref: (R_OUT, R_IN)    block-diagonal weight (input dtype)
    # b_ref: (R_OUT, 1)       bias column, float32
    # o_ref: (R_OUT, TILE_L)  packed output rows (TILE_B batches x C_out channels)
    r_out, r_in = w_ref.shape

    if r_in <= _FMA_MAX_ROWS and r_out <= _FMA_MAX_ROWS:
        # Tiny channel mix: unrolled VPU broadcast-FMAs on full vregs, bias
        # folded into the accumulator init.  Rows are read (and upcast) one at
        # a time straight from the ref to keep vreg pressure / VMEM temps low.
        w = w_ref[...].astype(jnp.float32)
        acc = b_ref[...]
        for k in range(r_in):
            acc = acc + w[:, k:k + 1] * x_ref[pl.ds(k, 1), :].astype(jnp.float32)
    else:
        # Larger channel mix: one MXU matmul in the input precision with an f32
        # accumulator (no full-tile upcast of x).
        acc = jnp.dot(w_ref[...], x_ref[...],
                      preferred_element_type=jnp.float32) + b_ref[...]

    # f32 tanh -> EUP slot; cast to the storage dtype only at the store.
    o_ref[...] = jnp.tanh(acc).astype(o_ref.dtype)


def _round_up(x, m):
    return (x + m - 1) // m * m


def _sublanes(dtype):
    return max(8, 32 // jnp.dtype(dtype).itemsize)


def _vmem_capacity_bytes():
    try:
        cap = int(pltpu.get_tpu_info().vmem_capacity_bytes)
        if cap > 0:
            return cap
    except Exception:
        pass
    return 64 * 1024 * 1024   # v7x per-core physical VMEM: safe lower bound


def _pick_tile_b(batch, c_in, c_out, sub_in, sub_out, max_rows=64):
    """Batches packed per grid step so block rows fill the sublanes.

    A candidate is only legal if each flattened block's row count is a sublane
    multiple or covers the whole flattened row dim (Pallas block-shape rule).
    """
    best_key, best_tb = None, 1
    for tb in range(1, batch + 1):
        if batch % tb:
            continue
        r_in, r_out = tb * c_in, tb * c_out
        if not ((r_in % sub_in == 0 or tb == batch) and
                (r_out % sub_out == 0 or tb == batch)):
            continue
        fill = 0.5 * (r_in / _round_up(r_in, sub_in) +
                      r_out / _round_up(r_out, sub_out))
        key = (max(r_in, r_out) <= max_rows, fill, -tb)
        if best_key is None or key > best_key:
            best_key, best_tb = key, tb
    return best_tb


def _pick_tile_l(length, max_cols):
    """Largest lane-aligned (multiple-of-128) tile <= max_cols dividing length."""
    if length <= max_cols or length % 128 != 0:
        return length
    m, d = length // 128, max(1, max_cols // 128)
    while m % d:
        d -= 1
    return 128 * d


def decoder_out_layer(ipt, weight, bias):
    """Forward pass of DecoderOutLayer (Conv1d k=1, s=1 + Tanh).

    ipt    : (B, C_in, L)      -- NCL, same as the PyTorch module
    weight : (C_out, C_in, 1)  -- nn.Conv1d weight
    bias   : (C_out,)          -- nn.Conv1d bias
    returns: (B, C_out, L)
    """
    B, C_in, L = ipt.shape
    C_out = weight.shape[0]
    assert weight.shape == (C_out, C_in, 1), "only kernel_size=1 is supported"

    in_dtype = jnp.dtype(ipt.dtype)
    out_dtype = in_dtype
    sub_in, sub_out = _sublanes(in_dtype), _sublanes(out_dtype)

    # ---- batch packing: fill the sublanes --------------------------------
    tile_b = _pick_tile_b(B, C_in, C_out, sub_in, sub_out)
    r_in, r_out = tile_b * C_in, tile_b * C_out

    # ---- VMEM-budget-aware length tile ------------------------------------
    vmem_cap = _vmem_capacity_bytes()
    # double-buffered in+out bytes per length column (sublane padding included)
    col_bytes = 2 * (_round_up(r_in, sub_in) * in_dtype.itemsize +
                     _round_up(r_out, sub_out) * jnp.dtype(out_dtype).itemsize)
    budget = min(int(0.25 * vmem_cap), 20 * 1024 * 1024)
    max_cols = max(128, (min(budget // col_bytes, _MAX_TILE_COLS) // 128) * 128)

    # ---- pad L only when it is both large and not lane-aligned ------------
    Lp = L
    x2d = ipt.reshape(B * C_in, L)
    if L % 128 != 0 and L > max_cols:
        Lp = _round_up(L, 128)
        x2d = jnp.pad(x2d, ((0, 0), (0, Lp - L)))

    # ---- keep >= ~8 grid steps so both v7x cores get pipelined work -------
    b_steps = B // tile_b
    want_l_steps = -(-8 // b_steps)           # ceil(8 / b_steps)
    if Lp % 128 == 0 and Lp // want_l_steps >= 128:
        max_cols = min(max_cols, (Lp // want_l_steps) // 128 * 128)

    tile_l = _pick_tile_l(Lp, max_cols)
    grid = (b_steps, Lp // tile_l)

    # ---- block-diagonal weight / tiled bias for the packed rows -----------
    w2d = weight[:, :, 0]
    if tile_b > 1:
        wbd = jnp.kron(jnp.eye(tile_b, dtype=w2d.dtype), w2d)
        bcol = jnp.tile(bias, tile_b)
    else:
        wbd, bcol = w2d, bias
    wbd = wbd.astype(in_dtype)                      # bf16 stays bf16 for the MXU
    bcol = bcol.astype(jnp.float32).reshape(r_out, 1)

    cost = pl.CostEstimate(
        flops=2 * B * L * C_in * C_out,
        transcendentals=B * L * C_out,
        bytes_accessed=in_dtype.itemsize * B * C_in * L
        + jnp.dtype(out_dtype).itemsize * B * C_out * L
        + int(wbd.size) * jnp.dtype(wbd.dtype).itemsize + int(bcol.size) * 4,
    )

    out2d = pl.pallas_call(
        _conv1x1_tanh_kernel,
        out_shape=jax.ShapeDtypeStruct((B * C_out, Lp), out_dtype),
        grid_spec=pltpu.PrefetchScalarGridSpec(
            num_scalar_prefetch=0,
            grid=grid,
            in_specs=[
                # Packed NCL rows, L in lanes; fresh (r_in, tile_l) tile per step.
                pl.BlockSpec((r_in, tile_l), lambda bi, li: (bi, li)),
                # Weight & bias stay resident across the whole grid.
                pl.BlockSpec((r_out, r_in), lambda bi, li: (0, 0)),
                pl.BlockSpec((r_out, 1), lambda bi, li: (0, 0)),
            ],
            out_specs=pl.BlockSpec((r_out, tile_l), lambda bi, li: (bi, li)),
        ),
        compiler_params=pltpu.CompilerParams(
            dimension_semantics=("parallel", "parallel"),
            vmem_limit_bytes=int(min(0.85 * vmem_cap, 56 * 1024 * 1024)),
        ),
        cost_estimate=cost,
    )(x2d, wbd, bcol)

    out = out2d.reshape(B, C_out, Lp)
    return out[:, :, :L] if Lp != L else out


if __name__ == "__main__":
    # Small shapes consistent with the module: batch=2, channel_in=4,
    # channel_out=4, length=16.
    B, C_in, C_out, L = 2, 4, 4, 16
    key = jax.random.PRNGKey(0)
    kx, kw, kb = jax.random.split(key, 3)

    x = jax.random.normal(kx, (B, C_in, L), dtype=jnp.float32)
    bound = 1.0 / (C_in ** 0.5)     # Conv1d-like uniform init bound (k=1)
    weight = jax.random.uniform(kw, (C_out, C_in, 1), jnp.float32, -bound, bound)
    bias = jax.random.uniform(kb, (C_out,), jnp.float32, -bound, bound)

    def ref_fn(xx, ww, bb):
        return jnp.tanh(jnp.einsum("bcl,oc->bol", xx, ww[:, :, 0])
                        + bb[None, :, None])

    # 1) module-default small shapes (VPU/FMA path, single full-length tile).
    out = jax.block_until_ready(decoder_out_layer(x, weight, bias))
    assert out.shape == (B, C_out, L)
    assert jnp.allclose(out, ref_fn(x, weight, bias), atol=1e-5, rtol=1e-5)

    # 2) longer sequence -> multi-step, lane-aligned tiled grid.
    L2 = 2048
    x2 = jax.random.normal(kx, (B, C_in, L2), dtype=jnp.float32)
    out2 = jax.block_until_ready(decoder_out_layer(x2, weight, bias))
    assert jnp.allclose(out2, ref_fn(x2, weight, bias), atol=1e-5, rtol=1e-5)

    # 3) bf16 input: no full-tile f32 upcast, bf16-precision params.
    x2b = x2.astype(jnp.bfloat16)
    out3 = jax.block_until_ready(decoder_out_layer(x2b, weight, bias))
    assert out3.dtype == jnp.bfloat16
    assert jnp.allclose(out3.astype(jnp.float32), ref_fn(x2, weight, bias),
                        atol=3e-2, rtol=3e-2)

    # 4) wider channels -> MXU (block-diagonal dot) path.
    C2 = 16
    kx2, kw2, kb2 = jax.random.split(jax.random.PRNGKey(0), 3)
    x4 = jax.random.normal(kx2, (B, C2, 256), dtype=jnp.float32)
    w4 = jax.random.uniform(kw2, (C2, C2, 1), jnp.float32, -0.25, 0.25)
    b4 = jax.random.uniform(kb2, (C2,), jnp.float32, -0.25, 0.25)
    out4 = jax.block_until_ready(decoder_out_layer(x4, w4, b4))
    assert jnp.allclose(out4, ref_fn(x4, w4, b4), atol=2e-2, rtol=2e-2)

    print("KERNEL_OK")
</pallas_src>

<mosaic_0001>
module attributes {stable_mosaic.version = 11 : i64} {
  func.func @_conv1x1_tanh_kernel(%arg0: i32, %arg1: i32, %arg2: memref<8x16xf32, #tpu.memory_space<vmem>>, %arg3: memref<8x8xf32, #tpu.memory_space<vmem>>, %arg4: memref<8x1xf32, #tpu.memory_space<vmem>>, %arg5: memref<8x16xf32, #tpu.memory_space<vmem>>) attributes {dimension_semantics = [#tpu.dimension_semantics<parallel>, #tpu.dimension_semantics<parallel>], iteration_bounds = array<i64: 1, 1>, scalar_prefetch = 0 : i64, scratch_operands = 0 : i64, tpu.core_type = #tpu.core_type<tc>, window_params = [{transform_indices = @transform_0, window_bounds = array<i64: 8, 16>}, {pipeline_mode = #tpu.pipeline_mode<synchronous>, transform_indices = @transform_1, window_bounds = array<i64: 8, 8>}, {pipeline_mode = #tpu.pipeline_mode<synchronous>, transform_indices = @transform_2, window_bounds = array<i64: 8, 1>}, {transform_indices = @transform_3, window_bounds = array<i64: 8, 16>}]} {
    %c0 = arith.constant 0 : index
    %c0_0 = arith.constant 0 : index
    %0 = vector.load %arg3[%c0, %c0_0] : memref<8x8xf32, #tpu.memory_space<vmem>>, vector<8x8xf32>
    %c0_1 = arith.constant 0 : index
    %c0_2 = arith.constant 0 : index
    %1 = vector.load %arg4[%c0_1, %c0_2] : memref<8x1xf32, #tpu.memory_space<vmem>>, vector<8x1xf32>
    %2 = vector.extract_strided_slice %0 {offsets = [0, 0], sizes = [8, 1], strides = [1, 1]} : vector<8x8xf32> to vector<8x1xf32>
    %c0_3 = arith.constant 0 : index
    %c0_4 = arith.constant 0 : index
    %3 = vector.load %arg2[%c0_3, %c0_4] : memref<8x16xf32, #tpu.memory_space<vmem>>, vector<1x16xf32>
    %4 = vector.broadcast %2 : vector<8x1xf32> to vector<8x16xf32>
    %5 = vector.broadcast %3 : vector<1x16xf32> to vector<8x16xf32>
    %6 = arith.mulf %4, %5 : vector<8x16xf32>
    %7 = vector.broadcast %1 : vector<8x1xf32> to vector<8x16xf32>
    %8 = arith.addf %7, %6 : vector<8x16xf32>
    %9 = vector.extract_strided_slice %0 {offsets = [0, 1], sizes = [8, 1], strides = [1, 1]} : vector<8x8xf32> to vector<8x1xf32>
    %c1 = arith.constant 1 : index
    %c0_5 = arith.constant 0 : index
    %10 = vector.load %arg2[%c1, %c0_5] : memref<8x16xf32, #tpu.memory_space<vmem>>, vector<1x16xf32>
    %11 = vector.broadcast %9 : vector<8x1xf32> to vector<8x16xf32>
    %12 = vector.broadcast %10 : vector<1x16xf32> to vector<8x16xf32>
    %13 = arith.mulf %11, %12 : vector<8x16xf32>
    %14 = arith.addf %8, %13 : vector<8x16xf32>
    %15 = vector.extract_strided_slice %0 {offsets = [0, 2], sizes = [8, 1], strides = [1, 1]} : vector<8x8xf32> to vector<8x1xf32>
    %c2 = arith.constant 2 : index
    %c0_6 = arith.constant 0 : index
    %16 = vector.load %arg2[%c2, %c0_6] : memref<8x16xf32, #tpu.memory_space<vmem>>, vector<1x16xf32>
    %17 = vector.broadcast %15 : vector<8x1xf32> to vector<8x16xf32>
    %18 = vector.broadcast %16 : vector<1x16xf32> to vector<8x16xf32>
    %19 = arith.mulf %17, %18 : vector<8x16xf32>
    %20 = arith.addf %14, %19 : vector<8x16xf32>
    %21 = vector.extract_strided_slice %0 {offsets = [0, 3], sizes = [8, 1], strides = [1, 1]} : vector<8x8xf32> to vector<8x1xf32>
    %c3 = arith.constant 3 : index
    %c0_7 = arith.constant 0 : index
    %22 = vector.load %arg2[%c3, %c0_7] : memref<8x16xf32, #tpu.memory_space<vmem>>, vector<1x16xf32>
    %23 = vector.broadcast %21 : vector<8x1xf32> to vector<8x16xf32>
    %24 = vector.broadcast %22 : vector<1x16xf32> to vector<8x16xf32>
    %25 = arith.mulf %23, %24 : vector<8x16xf32>
    %26 = arith.addf %20, %25 : vector<8x16xf32>
    %27 = vector.extract_strided_slice %0 {offsets = [0, 4], sizes = [8, 1], strides = [1, 1]} : vector<8x8xf32> to vector<8x1xf32>
    %c4 = arith.constant 4 : index
    %c0_8 = arith.constant 0 : index
    %28 = vector.load %arg2[%c4, %c0_8] : memref<8x16xf32, #tpu.memory_space<vmem>>, vector<1x16xf32>
    %29 = vector.broadcast %27 : vector<8x1xf32> to vector<8x16xf32>
    %30 = vector.broadcast %28 : vector<1x16xf32> to vector<8x16xf32>
    %31 = arith.mulf %29, %30 : vector<8x16xf32>
    %32 = arith.addf %26, %31 : vector<8x16xf32>
    %33 = vector.extract_strided_slice %0 {offsets = [0, 5], sizes = [8, 1], strides = [1, 1]} : vector<8x8xf32> to vector<8x1xf32>
    %c5 = arith.constant 5 : index
    %c0_9 = arith.constant 0 : index
    %34 = vector.load %arg2[%c5, %c0_9] : memref<8x16xf32, #tpu.memory_space<vmem>>, vector<1x16xf32>
    %35 = vector.broadcast %33 : vector<8x1xf32> to vector<8x16xf32>
    %36 = vector.broadcast %34 : vector<1x16xf32> to vector<8x16xf32>
    %37 = arith.mulf %35, %36 : vector<8x16xf32>
    %38 = arith.addf %32, %37 : vector<8x16xf32>
    %39 = vector.extract_strided_slice %0 {offsets = [0, 6], sizes = [8, 1], strides = [1, 1]} : vector<8x8xf32> to vector<8x1xf32>
    %c6 = arith.constant 6 : index
    %c0_10 = arith.constant 0 : index
    %40 = vector.load %arg2[%c6, %c0_10] : memref<8x16xf32, #tpu.memory_space<vmem>>, vector<1x16xf32>
    %41 = vector.broadcast %39 : vector<8x1xf32> to vector<8x16xf32>
    %42 = vector.broadcast %40 : vector<1x16xf32> to vector<8x16xf32>
    %43 = arith.mulf %41, %42 : vector<8x16xf32>
    %44 = arith.addf %38, %43 : vector<8x16xf32>
    %45 = vector.extract_strided_slice %0 {offsets = [0, 7], sizes = [8, 1], strides = [1, 1]} : vector<8x8xf32> to vector<8x1xf32>
    %c7 = arith.constant 7 : index
    %c0_11 = arith.constant 0 : index
    %46 = vector.load %arg2[%c7, %c0_11] : memref<8x16xf32, #tpu.memory_space<vmem>>, vector<1x16xf32>
    %47 = vector.broadcast %45 : vector<8x1xf32> to vector<8x16xf32>
    %48 = vector.broadcast %46 : vector<1x16xf32> to vector<8x16xf32>
    %49 = arith.mulf %47, %48 : vector<8x16xf32>
    %50 = arith.addf %44, %49 : vector<8x16xf32>
    %51 = math.tanh %50 : vector<8x16xf32>
    %c0_12 = arith.constant 0 : index
    %c0_13 = arith.constant 0 : index
    %52 = vector.load %arg5[%c0_12, %c0_13] : memref<8x16xf32, #tpu.memory_space<vmem>>, vector<8x16xf32>
    tpu.vector_store %arg5[%c0_12, %c0_13], %51 {strides = array<i32>} : memref<8x16xf32, #tpu.memory_space<vmem>>, vector<8x16xf32>,
    return
  }
  func.func @transform_0(%arg0: i32, %arg1: i32) -> (i32, i32) {
    %c0_i32 = arith.constant 0 : i32
    return %arg0, %arg1 : i32, i32
  }
  func.func @transform_1(%arg0: i32, %arg1: i32) -> (i32, i32) {
    %c0_i32 = arith.constant 0 : i32
    %c0_i32_0 = arith.constant 0 : i32
    %c0_i32_1 = arith.constant 0 : i32
    return %c0_i32, %c0_i32_0 : i32, i32
  }
  func.func @transform_2(%arg0: i32, %arg1: i32) -> (i32, i32) {
    %c0_i32 = arith.constant 0 : i32
    %c0_i32_0 = arith.constant 0 : i32
    %c0_i32_1 = arith.constant 0 : i32
    return %c0_i32, %c0_i32_0 : i32, i32
  }
  func.func @transform_3(%arg0: i32, %arg1: i32) -> (i32, i32) {
    %c0_i32 = arith.constant 0 : i32
    return %arg0, %arg1 : i32, i32
  }
}

</mosaic_0001>

<llo_original>
// kernel: tpu_custom_call.1
$region0: #{tpu_custom_call.1}
  #allocation0 [shape = 'u32[]', space=smem, size = 0x4, offset = 0x4, fixed_abs, tag = 'smem constant byte address 0x4 - core index']
  #allocation1 [shape = 'u32[72,128]{1,0:T(1,128)}', space=vmem, size = 0x9000, scoped, tag = 'internal scratch']
  %s0 = inlined_call_operand.vmem [shape: f32[8,16], index: 0, kind: input, shape index: {}]
  %s1 = inlined_call_operand.hbm [shape: f32[8,8], index: 1, kind: input, shape index: {}]
  %s2 = inlined_call_operand.vmem [shape: f32[8,1], index: 2, kind: input, shape index: {}]
  %s3 = inlined_call_operand.hbm [shape: f32[8,16], index: 3, kind: output, shape index: {}]
  %s4 = sld [smem:[#allocation0]]
  $region26: #{tpu_custom_call.1} parent=0
    _
  %s6 = ssub.s32 1, %s4
  %s7 = scalar_select 0, %s6, %s4
  $region1: #{tpu_custom_call.1} parent=0
    #allocation2 [shape = 'u8[4096]{0}', space=vmem, size = 0x1000, scoped, tag = 'input window, operand 1, single buffered']
    #allocation3 [shape = 's32[1]{0}', space=sflag, size = 0x4, scoped, tag = 'scoped memory for tpu_custom_call.1']
    #allocation4 [shape = 's32[1]{0}', space=sflag, size = 0x4, scoped, tag = 'scoped memory for tpu_custom_call.1']
    #allocation5 [shape = 'u8[4096]{0}', space=vmem, size = 0x1000, scoped, tag = 'output window, operand 0, single buffered']
    %8 = vsyncpa [#allocation3], 0
    %9 = vsyncpa [#allocation4], 0
    // Predicated region
    $region2: #{tpu_custom_call.1} parent=1 // pred_check
      _
    $region3: #{tpu_custom_call.1} parent=1 // pred_check_branch
      %11 = sbr.rel (0) target = $region5
    $region4: #{tpu_custom_call.1} parent=1 // pred_region
      _
    $region5: #{tpu_custom_call.1} parent=1 // pred_fallthru
      _
    // Predicated region
    $region6: #{tpu_custom_call.1} parent=1 // pred_check
      _
    $region7: #{tpu_custom_call.1} parent=1 // pred_check_branch
      %13 = sbr.rel (0) target = $region9
    $region8: #{tpu_custom_call.1} parent=1 // pred_region
      %15 = vsyncadd [#allocation3], 0
      %s17 = sshll.u32 %s1, 4
      %s18 = int_to_ptr.hbm [resolvable:$true] %s17
      %s19 = sshll.u32 [#allocation2], 4
      %s20 = int_to_ptr.vmem [resolvable:$true] %s19
      %22 = dma.hbm_to_vmem [thread:$0]  %s18, 128, %s20, [#allocation3]
    $region9: #{tpu_custom_call.1} parent=1 // pred_fallthru
      _
    // Predicated region
    $region10: #{tpu_custom_call.1} parent=1 // pred_check
      _
    $region11: #{tpu_custom_call.1} parent=1 // pred_check_branch
      %24 = sbr.rel (0) target = $region13
    $region12: #{tpu_custom_call.1} parent=1 // pred_region
      _
    $region13: #{tpu_custom_call.1} parent=1 // pred_fallthru
      _
    // Predicated region
    $region14: #{tpu_custom_call.1} parent=1 // pred_check
      _
    $region15: #{tpu_custom_call.1} parent=1 // pred_check_branch
      %26 = sbr.rel (0) target = $region17
    $region16: #{tpu_custom_call.1} parent=1 // pred_region
      %28 = dma.done [#allocation3], 128
    $region17: #{tpu_custom_call.1} parent=1 // pred_fallthru
      _
    %v29 = vld [vmem:[#allocation2] sm:$0xff]
    %v30 = vld [vmem:[%s2] sm:$0xff]
    %v31 = vld [vmem:[%s0] sm:$0x1]
    %33 = vset.pattern.permute.xlu0 0
    %34 = vperm.xlu0 %33, %v29
    %v35 = vpop.permute.xlu0 %34
    %v37 = vperm.slane %v31, 0
    %v38 = vmul.f32 %v35, %v37
    %40 = vset.pattern.permute.xlu0 0
    %41 = vperm.xlu0 %40, %v30
    %v42 = vpop.permute.xlu0 %41
    %v44 = vadd.f32 %v42, %v38
    %v45 = vld [vmem:[%s0 + $0x1] sm:$0x1]
    %46 = vset.pattern.permute.xlu0 1
    %47 = vperm.xlu0 %46, %v29
    %v48 = vpop.permute.xlu0 %47
    %v50 = vperm.slane %v45, 0
    %v51 = vmul.f32 %v48, %v50
    %v52 = vadd.f32 %v44, %v51
    %v53 = vld [vmem:[%s0 + $0x2] sm:$0x1]
    %54 = vset.pattern.permute.xlu0 2
    %55 = vperm.xlu0 %54, %v29
    %v56 = vpop.permute.xlu0 %55
    %v58 = vperm.slane %v53, 0
    %v59 = vmul.f32 %v56, %v58
    %v60 = vadd.f32 %v52, %v59
    %v61 = vld [vmem:[%s0 + $0x3] sm:$0x1]
    %62 = vset.pattern.permute.xlu0 3
    %63 = vperm.xlu0 %62, %v29
    %v64 = vpop.permute.xlu0 %63
    %v66 = vperm.slane %v61, 0
    %v67 = vmul.f32 %v64, %v66
    %v68 = vadd.f32 %v60, %v67
    %v69 = vld [vmem:[%s0 + $0x4] sm:$0x1]
    %70 = vset.pattern.permute.xlu0 4
    %71 = vperm.xlu0 %70, %v29
    %v72 = vpop.permute.xlu0 %71
    %v74 = vperm.slane %v69, 0
    %v75 = vmul.f32 %v72, %v74
    %v76 = vadd.f32 %v68, %v75
    %v77 = vld [vmem:[%s0 + $0x5] sm:$0x1]
    %78 = vset.pattern.permute.xlu0 5
    %79 = vperm.xlu0 %78, %v29
    %v80 = vpop.permute.xlu0 %79
    %v82 = vperm.slane %v77, 0
    %v83 = vmul.f32 %v80, %v82
    %v84 = vadd.f32 %v76, %v83
    %v85 = vld [vmem:[%s0 + $0x6] sm:$0x1]
    %86 = vset.pattern.permute.xlu0 6
    %87 = vperm.xlu0 %86, %v29
    %v88 = vpop.permute.xlu0 %87
    %v90 = vperm.slane %v85, 0
    %v91 = vmul.f32 %v88, %v90
    %v92 = vadd.f32 %v84, %v91
    %v93 = vld [vmem:[%s0 + $0x7] sm:$0x1]
    %94 = vset.pattern.permute.xlu0 7
    %95 = vperm.xlu0 %94, %v29
    %v96 = vpop.permute.xlu0 %95
    %v98 = vperm.slane %v93, 0
    %v99 = vmul.f32 %v96, %v98
    %v100 = vadd.f32 %v92, %v99
    %v101 = vtanh.pop %v100
    %vm102 = vcmask 130048
    %103 = vst.msk [vmem:[#allocation5] sm:$0xff] %vm102, %v101
    // Predicated region
    $region18: #{tpu_custom_call.1} parent=1 // pred_check
      _
    $region19: #{tpu_custom_call.1} parent=1 // pred_check_branch
      %105 = sbr.rel (0) target = $region21
    $region20: #{tpu_custom_call.1} parent=1 // pred_region
      %107 = vsyncadd [#allocation4], 0
      %s109 = sshll.u32 [#allocation5], 4
      %s110 = int_to_ptr.vmem [resolvable:$true] %s109
      %s111 = sshll.u32 %s3, 4
      %s112 = int_to_ptr.hbm [resolvable:$true] %s111
      %114 = dma.vmem_to_hbm [thread:$0]  %s110, 128, %s112, [#allocation4]
    $region21: #{tpu_custom_call.1} parent=1 // pred_fallthru
      _
    // Predicated region
    $region22: #{tpu_custom_call.1} parent=1 // pred_check
      _
    $region23: #{tpu_custom_call.1} parent=1 // pred_check_branch
      %116 = sbr.rel (0) target = $region25
    $region24: #{tpu_custom_call.1} parent=1 // pred_region
      %118 = dma.done [#allocation4], 128
    $region25: #{tpu_custom_call.1} parent=1 // pred_fallthru
      _
    %119 = vsyncpa [#allocation3], 1
    %120 = vsyncpa [#allocation4], 1

</llo_original>
